<compile_context>
chip_gen: v6e
topology: v6e:2x2x1
jax: 0.10.0
libtpu: 0.0.40
codegen_flags: <defaults>
</compile_context>

<pallas_src>
import jax
import jax.numpy as jnp
from jax.experimental import pallas as pl
from jax.experimental.pallas import tpu as pltpu

LATENT_DIM = 64
REG_WEIGHT = 1e-4


def _bprmf_loss_kernel(u_idx_ref, p_idx_ref, n_idx_ref,   # scalar-prefetch (SMEM, int32)
                       user_tbl_ref, item_tbl_ref,        # VMEM embedding tables
                       out_ref,                           # (1,1) SMEM scalar loss
                       g_ref):                            # (3, B, D) VMEM gather scratch
    batch = g_ref.shape[1]
    inv_b = 1.0 / batch                                   # trace-time constant

    # ---- fused gather: embedding rows -> stacked scratch (3, B, D) -----------
    def gather_row(i, carry):
        u_row = user_tbl_ref[pl.ds(u_idx_ref[i], 1), :]   # (1, D)
        p_row = item_tbl_ref[pl.ds(p_idx_ref[i], 1), :]   # (1, D)
        n_row = item_tbl_ref[pl.ds(n_idx_ref[i], 1), :]   # (1, D)
        g_ref[0, pl.ds(i, 1), :] = u_row
        g_ref[1, pl.ds(i, 1), :] = p_row
        g_ref[2, pl.ds(i, 1), :] = n_row
        return carry

    jax.lax.fori_loop(0, batch, gather_row, 0, unroll=True)

    # ---- batched math on the stacked buffer ----------------------------------
    g = g_ref[...]                                        # (3, B, D)
    u = g[0:1]                                            # (1, B, D)
    pn = g[1:3]                                           # (2, B, D): [pos; neg]

    # Both dot products with one multiply + one lane reduction.
    dots = jnp.sum(pn * u, axis=-1, keepdims=True)        # (2, B, 1)
    scores = jax.nn.sigmoid(dots)                         # one transcendental pass
    diff = scores[0] - scores[1]                          # (B, 1)

    # -logsigmoid(x) == softplus(-x)  (numerically stable)
    cf_loss = jnp.sum(jax.nn.softplus(-diff)) * inv_b

    # reg = mean(sum(u^2)/2) + mean(sum(p^2)/2) + mean(sum(n^2)/2)
    #     = sum(g*g) / (2*B)   -- single multiply + single full reduction
    reg_loss = jnp.sum(g * g) * (0.5 * inv_b)

    out_ref[0, 0] = cf_loss + REG_WEIGHT * reg_loss


@jax.jit
def bprmf_forward(user_emb_table, item_emb_table,
                  user_indices, pos_item_indices, neg_item_indices):
    user_emb_table = user_emb_table.astype(jnp.float32)
    item_emb_table = item_emb_table.astype(jnp.float32)
    u_idx = user_indices.astype(jnp.int32)
    p_idx = pos_item_indices.astype(jnp.int32)
    n_idx = neg_item_indices.astype(jnp.int32)

    batch = u_idx.shape[0]

    grid_spec = pltpu.PrefetchScalarGridSpec(
        num_scalar_prefetch=3,                 # u_idx, p_idx, n_idx -> SMEM
        grid=(1,),
        in_specs=[
            pl.BlockSpec(memory_space=pltpu.MemorySpace.VMEM),   # user table
            pl.BlockSpec(memory_space=pltpu.MemorySpace.VMEM),   # item table
        ],
        out_specs=pl.BlockSpec(memory_space=pltpu.MemorySpace.SMEM),
        scratch_shapes=[pltpu.VMEM((3, batch, LATENT_DIM), jnp.float32)],
    )

    loss = pl.pallas_call(
        _bprmf_loss_kernel,
        out_shape=jax.ShapeDtypeStruct((1, 1), jnp.float32),
        grid_spec=grid_spec,
        compiler_params=pltpu.CompilerParams(
            dimension_semantics=("arbitrary",)),
    )(u_idx, p_idx, n_idx, user_emb_table, item_emb_table)
    return loss[0, 0]


def _reference_forward(user_emb_table, item_emb_table, u_idx, p_idx, n_idx):
    u = jnp.take(user_emb_table, u_idx, axis=0)
    p = jnp.take(item_emb_table, p_idx, axis=0)
    n = jnp.take(item_emb_table, n_idx, axis=0)
    pos_scores = jax.nn.sigmoid(jnp.sum(u * p, axis=1))
    neg_scores = jax.nn.sigmoid(jnp.sum(u * n, axis=1))
    cf_loss = jnp.mean(jax.nn.softplus(-(pos_scores - neg_scores)))
    reg = (jnp.mean(jnp.sum(u ** 2, axis=1) / 2.0)
           + jnp.mean(jnp.sum(p ** 2, axis=1) / 2.0)
           + jnp.mean(jnp.sum(n ** 2, axis=1) / 2.0))
    return cf_loss + REG_WEIGHT * reg


if __name__ == "__main__":
    key = jax.random.PRNGKey(0)
    k_u, k_i, k_idx = jax.random.split(key, 3)

    num_users, num_items, batch = 32, 48, 8

    # nn.Embedding default init ~ N(0, 1), deterministic here.
    user_emb_table = jax.random.normal(k_u, (num_users, LATENT_DIM), jnp.float32)
    item_emb_table = jax.random.normal(k_i, (num_items, LATENT_DIM), jnp.float32)

    k1, k2, k3 = jax.random.split(k_idx, 3)
    user_indices = jax.random.randint(k1, (batch,), 0, num_users, jnp.int32)
    pos_item_indices = jax.random.randint(k2, (batch,), 0, num_items, jnp.int32)
    neg_item_indices = jax.random.randint(k3, (batch,), 0, num_items, jnp.int32)

    loss = bprmf_forward(user_emb_table, item_emb_table,
                         user_indices, pos_item_indices, neg_item_indices)
    loss = jax.block_until_ready(loss)

    ref = _reference_forward(user_emb_table, item_emb_table,
                             user_indices, pos_item_indices, neg_item_indices)
    ref = jax.block_until_ready(ref)

    assert jnp.allclose(loss, ref, rtol=1e-5, atol=1e-5), (loss, ref)
    print("KERNEL_OK")
</pallas_src>

<mosaic_0001>
module attributes {stable_mosaic.version = 11 : i64} {
  func.func @_bprmf_loss_kernel(%arg0: i32, %arg1: memref<8xi32, #tpu.memory_space<smem>>, %arg2: memref<8xi32, #tpu.memory_space<smem>>, %arg3: memref<8xi32, #tpu.memory_space<smem>>, %arg4: memref<32x64xf32, #tpu.memory_space<vmem>>, %arg5: memref<48x64xf32, #tpu.memory_space<vmem>>, %arg6: memref<1x1xf32, #tpu.memory_space<smem>>, %arg7: memref<3x8x64xf32, #tpu.memory_space<vmem>>) attributes {dimension_semantics = [#tpu.dimension_semantics<arbitrary>], iteration_bounds = array<i64: 1>, scalar_prefetch = 3 : i64, scratch_operands = 1 : i64, tpu.core_type = #tpu.core_type<tc>, window_params = [{pipeline_mode = #tpu.pipeline_mode<synchronous>, transform_indices = @transform_0, window_bounds = array<i64: 32, 64>}, {pipeline_mode = #tpu.pipeline_mode<synchronous>, transform_indices = @transform_1, window_bounds = array<i64: 48, 64>}, {transform_indices = @transform_2, window_bounds = array<i64: 1, 1>}]} {
    %c0_i32 = arith.constant 0 : i32
    %0 = arith.index_cast %c0_i32 : i32 to index
    %1 = memref.load %arg1[%0] : memref<8xi32, #tpu.memory_space<smem>>
    %2 = arith.index_cast %1 : i32 to index
    %c0 = arith.constant 0 : index
    %3 = vector.load %arg4[%2, %c0] : memref<32x64xf32, #tpu.memory_space<vmem>>, vector<1x64xf32>
    %4 = arith.index_cast %c0_i32 : i32 to index
    %5 = memref.load %arg2[%4] : memref<8xi32, #tpu.memory_space<smem>>
    %6 = arith.index_cast %5 : i32 to index
    %c0_0 = arith.constant 0 : index
    %7 = vector.load %arg5[%6, %c0_0] : memref<48x64xf32, #tpu.memory_space<vmem>>, vector<1x64xf32>
    %8 = arith.index_cast %c0_i32 : i32 to index
    %9 = memref.load %arg3[%8] : memref<8xi32, #tpu.memory_space<smem>>
    %10 = arith.index_cast %9 : i32 to index
    %c0_1 = arith.constant 0 : index
    %11 = vector.load %arg5[%10, %c0_1] : memref<48x64xf32, #tpu.memory_space<vmem>>, vector<1x64xf32>
    %c0_2 = arith.constant 0 : index
    %12 = arith.index_cast %c0_i32 : i32 to index
    %c0_3 = arith.constant 0 : index
    %13 = vector.load %arg7[%c0_2, %12, %c0_3] : memref<3x8x64xf32, #tpu.memory_space<vmem>>, vector<1x1x64xf32>
    %14 = vector.shape_cast %13 : vector<1x1x64xf32> to vector<1x64xf32>
    %15 = vector.shape_cast %3 : vector<1x64xf32> to vector<1x1x64xf32>
    tpu.vector_store %arg7[%c0_2, %12, %c0_3], %15 {strides = array<i32>} : memref<3x8x64xf32, #tpu.memory_space<vmem>>, vector<1x1x64xf32>,
    %c1 = arith.constant 1 : index
    %16 = arith.index_cast %c0_i32 : i32 to index
    %c0_4 = arith.constant 0 : index
    %17 = vector.load %arg7[%c1, %16, %c0_4] : memref<3x8x64xf32, #tpu.memory_space<vmem>>, vector<1x1x64xf32>
    %18 = vector.shape_cast %17 : vector<1x1x64xf32> to vector<1x64xf32>
    %19 = vector.shape_cast %7 : vector<1x64xf32> to vector<1x1x64xf32>
    tpu.vector_store %arg7[%c1, %16, %c0_4], %19 {strides = array<i32>} : memref<3x8x64xf32, #tpu.memory_space<vmem>>, vector<1x1x64xf32>,
    %c2 = arith.constant 2 : index
    %20 = arith.index_cast %c0_i32 : i32 to index
    %c0_5 = arith.constant 0 : index
    %21 = vector.load %arg7[%c2, %20, %c0_5] : memref<3x8x64xf32, #tpu.memory_space<vmem>>, vector<1x1x64xf32>
    %22 = vector.shape_cast %21 : vector<1x1x64xf32> to vector<1x64xf32>
    %23 = vector.shape_cast %11 : vector<1x64xf32> to vector<1x1x64xf32>
    tpu.vector_store %arg7[%c2, %20, %c0_5], %23 {strides = array<i32>} : memref<3x8x64xf32, #tpu.memory_space<vmem>>, vector<1x1x64xf32>,
    %c1_i32 = arith.constant 1 : i32
    %24 = arith.index_cast %c1_i32 : i32 to index
    %25 = memref.load %arg1[%24] : memref<8xi32, #tpu.memory_space<smem>>
    %26 = arith.index_cast %25 : i32 to index
    %c0_6 = arith.constant 0 : index
    %27 = vector.load %arg4[%26, %c0_6] : memref<32x64xf32, #tpu.memory_space<vmem>>, vector<1x64xf32>
    %28 = arith.index_cast %c1_i32 : i32 to index
    %29 = memref.load %arg2[%28] : memref<8xi32, #tpu.memory_space<smem>>
    %30 = arith.index_cast %29 : i32 to index
    %c0_7 = arith.constant 0 : index
    %31 = vector.load %arg5[%30, %c0_7] : memref<48x64xf32, #tpu.memory_space<vmem>>, vector<1x64xf32>
    %32 = arith.index_cast %c1_i32 : i32 to index
    %33 = memref.load %arg3[%32] : memref<8xi32, #tpu.memory_space<smem>>
    %34 = arith.index_cast %33 : i32 to index
    %c0_8 = arith.constant 0 : index
    %35 = vector.load %arg5[%34, %c0_8] : memref<48x64xf32, #tpu.memory_space<vmem>>, vector<1x64xf32>
    %c0_9 = arith.constant 0 : index
    %36 = arith.index_cast %c1_i32 : i32 to index
    %c0_10 = arith.constant 0 : index
    %37 = vector.load %arg7[%c0_9, %36, %c0_10] : memref<3x8x64xf32, #tpu.memory_space<vmem>>, vector<1x1x64xf32>
    %38 = vector.shape_cast %37 : vector<1x1x64xf32> to vector<1x64xf32>
    %39 = vector.shape_cast %27 : vector<1x64xf32> to vector<1x1x64xf32>
    tpu.vector_store %arg7[%c0_9, %36, %c0_10], %39 {strides = array<i32>} : memref<3x8x64xf32, #tpu.memory_space<vmem>>, vector<1x1x64xf32>,
    %c1_11 = arith.constant 1 : index
    %40 = arith.index_cast %c1_i32 : i32 to index
    %c0_12 = arith.constant 0 : index
    %41 = vector.load %arg7[%c1_11, %40, %c0_12] : memref<3x8x64xf32, #tpu.memory_space<vmem>>, vector<1x1x64xf32>
    %42 = vector.shape_cast %41 : vector<1x1x64xf32> to vector<1x64xf32>
    %43 = vector.shape_cast %31 : vector<1x64xf32> to vector<1x1x64xf32>
    tpu.vector_store %arg7[%c1_11, %40, %c0_12], %43 {strides = array<i32>} : memref<3x8x64xf32, #tpu.memory_space<vmem>>, vector<1x1x64xf32>,
    %c2_13 = arith.constant 2 : index
    %44 = arith.index_cast %c1_i32 : i32 to index
    %c0_14 = arith.constant 0 : index
    %45 = vector.load %arg7[%c2_13, %44, %c0_14] : memref<3x8x64xf32, #tpu.memory_space<vmem>>, vector<1x1x64xf32>
    %46 = vector.shape_cast %45 : vector<1x1x64xf32> to vector<1x64xf32>
    %47 = vector.shape_cast %35 : vector<1x64xf32> to vector<1x1x64xf32>
    tpu.vector_store %arg7[%c2_13, %44, %c0_14], %47 {strides = array<i32>} : memref<3x8x64xf32, #tpu.memory_space<vmem>>, vector<1x1x64xf32>,
    %c2_i32 = arith.constant 2 : i32
    %48 = arith.index_cast %c2_i32 : i32 to index
    %49 = memref.load %arg1[%48] : memref<8xi32, #tpu.memory_space<smem>>
    %50 = arith.index_cast %49 : i32 to index
    %c0_15 = arith.constant 0 : index
    %51 = vector.load %arg4[%50, %c0_15] : memref<32x64xf32, #tpu.memory_space<vmem>>, vector<1x64xf32>
    %52 = arith.index_cast %c2_i32 : i32 to index
    %53 = memref.load %arg2[%52] : memref<8xi32, #tpu.memory_space<smem>>
    %54 = arith.index_cast %53 : i32 to index
    %c0_16 = arith.constant 0 : index
    %55 = vector.load %arg5[%54, %c0_16] : memref<48x64xf32, #tpu.memory_space<vmem>>, vector<1x64xf32>
    %56 = arith.index_cast %c2_i32 : i32 to index
    %57 = memref.load %arg3[%56] : memref<8xi32, #tpu.memory_space<smem>>
    %58 = arith.index_cast %57 : i32 to index
    %c0_17 = arith.constant 0 : index
    %59 = vector.load %arg5[%58, %c0_17] : memref<48x64xf32, #tpu.memory_space<vmem>>, vector<1x64xf32>
    %c0_18 = arith.constant 0 : index
    %60 = arith.index_cast %c2_i32 : i32 to index
    %c0_19 = arith.constant 0 : index
    %61 = vector.load %arg7[%c0_18, %60, %c0_19] : memref<3x8x64xf32, #tpu.memory_space<vmem>>, vector<1x1x64xf32>
    %62 = vector.shape_cast %61 : vector<1x1x64xf32> to vector<1x64xf32>
    %63 = vector.shape_cast %51 : vector<1x64xf32> to vector<1x1x64xf32>
    tpu.vector_store %arg7[%c0_18, %60, %c0_19], %63 {strides = array<i32>} : memref<3x8x64xf32, #tpu.memory_space<vmem>>, vector<1x1x64xf32>,
    %c1_20 = arith.constant 1 : index
    %64 = arith.index_cast %c2_i32 : i32 to index
    %c0_21 = arith.constant 0 : index
    %65 = vector.load %arg7[%c1_20, %64, %c0_21] : memref<3x8x64xf32, #tpu.memory_space<vmem>>, vector<1x1x64xf32>
    %66 = vector.shape_cast %65 : vector<1x1x64xf32> to vector<1x64xf32>
    %67 = vector.shape_cast %55 : vector<1x64xf32> to vector<1x1x64xf32>
    tpu.vector_store %arg7[%c1_20, %64, %c0_21], %67 {strides = array<i32>} : memref<3x8x64xf32, #tpu.memory_space<vmem>>, vector<1x1x64xf32>,
    %c2_22 = arith.constant 2 : index
    %68 = arith.index_cast %c2_i32 : i32 to index
    %c0_23 = arith.constant 0 : index
    %69 = vector.load %arg7[%c2_22, %68, %c0_23] : memref<3x8x64xf32, #tpu.memory_space<vmem>>, vector<1x1x64xf32>
    %70 = vector.shape_cast %69 : vector<1x1x64xf32> to vector<1x64xf32>
    %71 = vector.shape_cast %59 : vector<1x64xf32> to vector<1x1x64xf32>
    tpu.vector_store %arg7[%c2_22, %68, %c0_23], %71 {strides = array<i32>} : memref<3x8x64xf32, #tpu.memory_space<vmem>>, vector<1x1x64xf32>,
    %c3_i32 = arith.constant 3 : i32
    %72 = arith.index_cast %c3_i32 : i32 to index
    %73 = memref.load %arg1[%72] : memref<8xi32, #tpu.memory_space<smem>>
    %74 = arith.index_cast %73 : i32 to index
    %c0_24 = arith.constant 0 : index
    %75 = vector.load %arg4[%74, %c0_24] : memref<32x64xf32, #tpu.memory_space<vmem>>, vector<1x64xf32>
    %76 = arith.index_cast %c3_i32 : i32 to index
    %77 = memref.load %arg2[%76] : memref<8xi32, #tpu.memory_space<smem>>
    %78 = arith.index_cast %77 : i32 to index
    %c0_25 = arith.constant 0 : index
    %79 = vector.load %arg5[%78, %c0_25] : memref<48x64xf32, #tpu.memory_space<vmem>>, vector<1x64xf32>
    %80 = arith.index_cast %c3_i32 : i32 to index
    %81 = memref.load %arg3[%80] : memref<8xi32, #tpu.memory_space<smem>>
    %82 = arith.index_cast %81 : i32 to index
    %c0_26 = arith.constant 0 : index
    %83 = vector.load %arg5[%82, %c0_26] : memref<48x64xf32, #tpu.memory_space<vmem>>, vector<1x64xf32>
    %c0_27 = arith.constant 0 : index
    %84 = arith.index_cast %c3_i32 : i32 to index
    %c0_28 = arith.constant 0 : index
    %85 = vector.load %arg7[%c0_27, %84, %c0_28] : memref<3x8x64xf32, #tpu.memory_space<vmem>>, vector<1x1x64xf32>
    %86 = vector.shape_cast %85 : vector<1x1x64xf32> to vector<1x64xf32>
    %87 = vector.shape_cast %75 : vector<1x64xf32> to vector<1x1x64xf32>
    tpu.vector_store %arg7[%c0_27, %84, %c0_28], %87 {strides = array<i32>} : memref<3x8x64xf32, #tpu.memory_space<vmem>>, vector<1x1x64xf32>,
    %c1_29 = arith.constant 1 : index
    %88 = arith.index_cast %c3_i32 : i32 to index
    %c0_30 = arith.constant 0 : index
    %89 = vector.load %arg7[%c1_29, %88, %c0_30] : memref<3x8x64xf32, #tpu.memory_space<vmem>>, vector<1x1x64xf32>
    %90 = vector.shape_cast %89 : vector<1x1x64xf32> to vector<1x64xf32>
    %91 = vector.shape_cast %79 : vector<1x64xf32> to vector<1x1x64xf32>
    tpu.vector_store %arg7[%c1_29, %88, %c0_30], %91 {strides = array<i32>} : memref<3x8x64xf32, #tpu.memory_space<vmem>>, vector<1x1x64xf32>,
    %c2_31 = arith.constant 2 : index
    %92 = arith.index_cast %c3_i32 : i32 to index
    %c0_32 = arith.constant 0 : index
    %93 = vector.load %arg7[%c2_31, %92, %c0_32] : memref<3x8x64xf32, #tpu.memory_space<vmem>>, vector<1x1x64xf32>
    %94 = vector.shape_cast %93 : vector<1x1x64xf32> to vector<1x64xf32>
    %95 = vector.shape_cast %83 : vector<1x64xf32> to vector<1x1x64xf32>
    tpu.vector_store %arg7[%c2_31, %92, %c0_32], %95 {strides = array<i32>} : memref<3x8x64xf32, #tpu.memory_space<vmem>>, vector<1x1x64xf32>,
    %c4_i32 = arith.constant 4 : i32
    %96 = arith.index_cast %c4_i32 : i32 to index
    %97 = memref.load %arg1[%96] : memref<8xi32, #tpu.memory_space<smem>>
    %98 = arith.index_cast %97 : i32 to index
    %c0_33 = arith.constant 0 : index
    %99 = vector.load %arg4[%98, %c0_33] : memref<32x64xf32, #tpu.memory_space<vmem>>, vector<1x64xf32>
    %100 = arith.index_cast %c4_i32 : i32 to index
    %101 = memref.load %arg2[%100] : memref<8xi32, #tpu.memory_space<smem>>
    %102 = arith.index_cast %101 : i32 to index
    %c0_34 = arith.constant 0 : index
    %103 = vector.load %arg5[%102, %c0_34] : memref<48x64xf32, #tpu.memory_space<vmem>>, vector<1x64xf32>
    %104 = arith.index_cast %c4_i32 : i32 to index
    %105 = memref.load %arg3[%104] : memref<8xi32, #tpu.memory_space<smem>>
    %106 = arith.index_cast %105 : i32 to index
    %c0_35 = arith.constant 0 : index
    %107 = vector.load %arg5[%106, %c0_35] : memref<48x64xf32, #tpu.memory_space<vmem>>, vector<1x64xf32>
    %c0_36 = arith.constant 0 : index
    %108 = arith.index_cast %c4_i32 : i32 to index
    %c0_37 = arith.constant 0 : index
    %109 = vector.load %arg7[%c0_36, %108, %c0_37] : memref<3x8x64xf32, #tpu.memory_space<vmem>>, vector<1x1x64xf32>
    %110 = vector.shape_cast %109 : vector<1x1x64xf32> to vector<1x64xf32>
    %111 = vector.shape_cast %99 : vector<1x64xf32> to vector<1x1x64xf32>
    tpu.vector_store %arg7[%c0_36, %108, %c0_37], %111 {strides = array<i32>} : memref<3x8x64xf32, #tpu.memory_space<vmem>>, vector<1x1x64xf32>,
    %c1_38 = arith.constant 1 : index
    %112 = arith.index_cast %c4_i32 : i32 to index
    %c0_39 = arith.constant 0 : index
    %113 = vector.load %arg7[%c1_38, %112, %c0_39] : memref<3x8x64xf32, #tpu.memory_space<vmem>>, vector<1x1x64xf32>
    %114 = vector.shape_cast %113 : vector<1x1x64xf32> to vector<1x64xf32>
    %115 = vector.shape_cast %103 : vector<1x64xf32> to vector<1x1x64xf32>
    tpu.vector_store %arg7[%c1_38, %112, %c0_39], %115 {strides = array<i32>} : memref<3x8x64xf32, #tpu.memory_space<vmem>>, vector<1x1x64xf32>,
    %c2_40 = arith.constant 2 : index
    %116 = arith.index_cast %c4_i32 : i32 to index
    %c0_41 = arith.constant 0 : index
    %117 = vector.load %arg7[%c2_40, %116, %c0_41] : memref<3x8x64xf32, #tpu.memory_space<vmem>>, vector<1x1x64xf32>
    %118 = vector.shape_cast %117 : vector<1x1x64xf32> to vector<1x64xf32>
    %119 = vector.shape_cast %107 : vector<1x64xf32> to vector<1x1x64xf32>
    tpu.vector_store %arg7[%c2_40, %116, %c0_41], %119 {strides = array<i32>} : memref<3x8x64xf32, #tpu.memory_space<vmem>>, vector<1x1x64xf32>,
    %c5_i32 = arith.constant 5 : i32
    %120 = arith.index_cast %c5_i32 : i32 to index
    %121 = memref.load %arg1[%120] : memref<8xi32, #tpu.memory_space<smem>>
    %122 = arith.index_cast %121 : i32 to index
    %c0_42 = arith.constant 0 : index
    %123 = vector.load %arg4[%122, %c0_42] : memref<32x64xf32, #tpu.memory_space<vmem>>, vector<1x64xf32>
    %124 = arith.index_cast %c5_i32 : i32 to index
    %125 = memref.load %arg2[%124] : memref<8xi32, #tpu.memory_space<smem>>
    %126 = arith.index_cast %125 : i32 to index
    %c0_43 = arith.constant 0 : index
    %127 = vector.load %arg5[%126, %c0_43] : memref<48x64xf32, #tpu.memory_space<vmem>>, vector<1x64xf32>
    %128 = arith.index_cast %c5_i32 : i32 to index
    %129 = memref.load %arg3[%128] : memref<8xi32, #tpu.memory_space<smem>>
    %130 = arith.index_cast %129 : i32 to index
    %c0_44 = arith.constant 0 : index
    %131 = vector.load %arg5[%130, %c0_44] : memref<48x64xf32, #tpu.memory_space<vmem>>, vector<1x64xf32>
    %c0_45 = arith.constant 0 : index
    %132 = arith.index_cast %c5_i32 : i32 to index
    %c0_46 = arith.constant 0 : index
    %133 = vector.load %arg7[%c0_45, %132, %c0_46] : memref<3x8x64xf32, #tpu.memory_space<vmem>>, vector<1x1x64xf32>
    %134 = vector.shape_cast %133 : vector<1x1x64xf32> to vector<1x64xf32>
    %135 = vector.shape_cast %123 : vector<1x64xf32> to vector<1x1x64xf32>
    tpu.vector_store %arg7[%c0_45, %132, %c0_46], %135 {strides = array<i32>} : memref<3x8x64xf32, #tpu.memory_space<vmem>>, vector<1x1x64xf32>,
    %c1_47 = arith.constant 1 : index
    %136 = arith.index_cast %c5_i32 : i32 to index
    %c0_48 = arith.constant 0 : index
    %137 = vector.load %arg7[%c1_47, %136, %c0_48] : memref<3x8x64xf32, #tpu.memory_space<vmem>>, vector<1x1x64xf32>
    %138 = vector.shape_cast %137 : vector<1x1x64xf32> to vector<1x64xf32>
    %139 = vector.shape_cast %127 : vector<1x64xf32> to vector<1x1x64xf32>
    tpu.vector_store %arg7[%c1_47, %136, %c0_48], %139 {strides = array<i32>} : memref<3x8x64xf32, #tpu.memory_space<vmem>>, vector<1x1x64xf32>,
    %c2_49 = arith.constant 2 : index
    %140 = arith.index_cast %c5_i32 : i32 to index
    %c0_50 = arith.constant 0 : index
    %141 = vector.load %arg7[%c2_49, %140, %c0_50] : memref<3x8x64xf32, #tpu.memory_space<vmem>>, vector<1x1x64xf32>
    %142 = vector.shape_cast %141 : vector<1x1x64xf32> to vector<1x64xf32>
    %143 = vector.shape_cast %131 : vector<1x64xf32> to vector<1x1x64xf32>
    tpu.vector_store %arg7[%c2_49, %140, %c0_50], %143 {strides = array<i32>} : memref<3x8x64xf32, #tpu.memory_space<vmem>>, vector<1x1x64xf32>,
    %c6_i32 = arith.constant 6 : i32
    %144 = arith.index_cast %c6_i32 : i32 to index
    %145 = memref.load %arg1[%144] : memref<8xi32, #tpu.memory_space<smem>>
    %146 = arith.index_cast %145 : i32 to index
    %c0_51 = arith.constant 0 : index
    %147 = vector.load %arg4[%146, %c0_51] : memref<32x64xf32, #tpu.memory_space<vmem>>, vector<1x64xf32>
    %148 = arith.index_cast %c6_i32 : i32 to index
    %149 = memref.load %arg2[%148] : memref<8xi32, #tpu.memory_space<smem>>
    %150 = arith.index_cast %149 : i32 to index
    %c0_52 = arith.constant 0 : index
    %151 = vector.load %arg5[%150, %c0_52] : memref<48x64xf32, #tpu.memory_space<vmem>>, vector<1x64xf32>
    %152 = arith.index_cast %c6_i32 : i32 to index
    %153 = memref.load %arg3[%152] : memref<8xi32, #tpu.memory_space<smem>>
    %154 = arith.index_cast %153 : i32 to index
    %c0_53 = arith.constant 0 : index
    %155 = vector.load %arg5[%154, %c0_53] : memref<48x64xf32, #tpu.memory_space<vmem>>, vector<1x64xf32>
    %c0_54 = arith.constant 0 : index
    %156 = arith.index_cast %c6_i32 : i32 to index
    %c0_55 = arith.constant 0 : index
    %157 = vector.load %arg7[%c0_54, %156, %c0_55] : memref<3x8x64xf32, #tpu.memory_space<vmem>>, vector<1x1x64xf32>
    %158 = vector.shape_cast %157 : vector<1x1x64xf32> to vector<1x64xf32>
    %159 = vector.shape_cast %147 : vector<1x64xf32> to vector<1x1x64xf32>
    tpu.vector_store %arg7[%c0_54, %156, %c0_55], %159 {strides = array<i32>} : memref<3x8x64xf32, #tpu.memory_space<vmem>>, vector<1x1x64xf32>,
    %c1_56 = arith.constant 1 : index
    %160 = arith.index_cast %c6_i32 : i32 to index
    %c0_57 = arith.constant 0 : index
    %161 = vector.load %arg7[%c1_56, %160, %c0_57] : memref<3x8x64xf32, #tpu.memory_space<vmem>>, vector<1x1x64xf32>
    %162 = vector.shape_cast %161 : vector<1x1x64xf32> to vector<1x64xf32>
    %163 = vector.shape_cast %151 : vector<1x64xf32> to vector<1x1x64xf32>
    tpu.vector_store %arg7[%c1_56, %160, %c0_57], %163 {strides = array<i32>} : memref<3x8x64xf32, #tpu.memory_space<vmem>>, vector<1x1x64xf32>,
    %c2_58 = arith.constant 2 : index
    %164 = arith.index_cast %c6_i32 : i32 to index
    %c0_59 = arith.constant 0 : index
    %165 = vector.load %arg7[%c2_58, %164, %c0_59] : memref<3x8x64xf32, #tpu.memory_space<vmem>>, vector<1x1x64xf32>
    %166 = vector.shape_cast %165 : vector<1x1x64xf32> to vector<1x64xf32>
    %167 = vector.shape_cast %155 : vector<1x64xf32> to vector<1x1x64xf32>
    tpu.vector_store %arg7[%c2_58, %164, %c0_59], %167 {strides = array<i32>} : memref<3x8x64xf32, #tpu.memory_space<vmem>>, vector<1x1x64xf32>,
    %c7_i32 = arith.constant 7 : i32
    %168 = arith.index_cast %c7_i32 : i32 to index
    %169 = memref.load %arg1[%168] : memref<8xi32, #tpu.memory_space<smem>>
    %170 = arith.index_cast %169 : i32 to index
    %c0_60 = arith.constant 0 : index
    %171 = vector.load %arg4[%170, %c0_60] : memref<32x64xf32, #tpu.memory_space<vmem>>, vector<1x64xf32>
    %172 = arith.index_cast %c7_i32 : i32 to index
    %173 = memref.load %arg2[%172] : memref<8xi32, #tpu.memory_space<smem>>
    %174 = arith.index_cast %173 : i32 to index
    %c0_61 = arith.constant 0 : index
    %175 = vector.load %arg5[%174, %c0_61] : memref<48x64xf32, #tpu.memory_space<vmem>>, vector<1x64xf32>
    %176 = arith.index_cast %c7_i32 : i32 to index
    %177 = memref.load %arg3[%176] : memref<8xi32, #tpu.memory_space<smem>>
    %178 = arith.index_cast %177 : i32 to index
    %c0_62 = arith.constant 0 : index
    %179 = vector.load %arg5[%178, %c0_62] : memref<48x64xf32, #tpu.memory_space<vmem>>, vector<1x64xf32>
    %c0_63 = arith.constant 0 : index
    %180 = arith.index_cast %c7_i32 : i32 to index
    %c0_64 = arith.constant 0 : index
    %181 = vector.load %arg7[%c0_63, %180, %c0_64] : memref<3x8x64xf32, #tpu.memory_space<vmem>>, vector<1x1x64xf32>
    %182 = vector.shape_cast %181 : vector<1x1x64xf32> to vector<1x64xf32>
    %183 = vector.shape_cast %171 : vector<1x64xf32> to vector<1x1x64xf32>
    tpu.vector_store %arg7[%c0_63, %180, %c0_64], %183 {strides = array<i32>} : memref<3x8x64xf32, #tpu.memory_space<vmem>>, vector<1x1x64xf32>,
    %c1_65 = arith.constant 1 : index
    %184 = arith.index_cast %c7_i32 : i32 to index
    %c0_66 = arith.constant 0 : index
    %185 = vector.load %arg7[%c1_65, %184, %c0_66] : memref<3x8x64xf32, #tpu.memory_space<vmem>>, vector<1x1x64xf32>
    %186 = vector.shape_cast %185 : vector<1x1x64xf32> to vector<1x64xf32>
    %187 = vector.shape_cast %175 : vector<1x64xf32> to vector<1x1x64xf32>
    tpu.vector_store %arg7[%c1_65, %184, %c0_66], %187 {strides = array<i32>} : memref<3x8x64xf32, #tpu.memory_space<vmem>>, vector<1x1x64xf32>,
    %c2_67 = arith.constant 2 : index
    %188 = arith.index_cast %c7_i32 : i32 to index
    %c0_68 = arith.constant 0 : index
    %189 = vector.load %arg7[%c2_67, %188, %c0_68] : memref<3x8x64xf32, #tpu.memory_space<vmem>>, vector<1x1x64xf32>
    %190 = vector.shape_cast %189 : vector<1x1x64xf32> to vector<1x64xf32>
    %191 = vector.shape_cast %179 : vector<1x64xf32> to vector<1x1x64xf32>
    tpu.vector_store %arg7[%c2_67, %188, %c0_68], %191 {strides = array<i32>} : memref<3x8x64xf32, #tpu.memory_space<vmem>>, vector<1x1x64xf32>,
    %c8_i32 = arith.constant 8 : i32
    %c0_69 = arith.constant 0 : index
    %c0_70 = arith.constant 0 : index
    %c0_71 = arith.constant 0 : index
    %192 = vector.load %arg7[%c0_69, %c0_70, %c0_71] : memref<3x8x64xf32, #tpu.memory_space<vmem>>, vector<3x8x64xf32>
    %193 = vector.extract_strided_slice %192 {offsets = [0, 0, 0], sizes = [1, 8, 64], strides = [1, 1, 1]} : vector<3x8x64xf32> to vector<1x8x64xf32>
    %194 = vector.extract_strided_slice %192 {offsets = [1, 0, 0], sizes = [2, 8, 64], strides = [1, 1, 1]} : vector<3x8x64xf32> to vector<2x8x64xf32>
    %195 = vector.broadcast %193 : vector<1x8x64xf32> to vector<2x8x64xf32>
    %196 = arith.mulf %194, %195 : vector<2x8x64xf32>
    %cst = arith.constant dense<0.000000e+00> : vector<2x8xf32>
    %197 = vector.multi_reduction <add>, %196, %cst [2] : vector<2x8x64xf32> to vector<2x8xf32>
    %198 = vector.shape_cast %197 : vector<2x8xf32> to vector<2x8x1xf32>
    %199 = arith.negf %198 : vector<2x8x1xf32>
    %200 = math.exp %199 : vector<2x8x1xf32>
    %cst_72 = arith.constant 1.000000e+00 : f32
    %201 = vector.broadcast %cst_72 : f32 to vector<2x8x1xf32>
    %202 = arith.addf %201, %200 : vector<2x8x1xf32>
    %203 = arith.divf %201, %202 : vector<2x8x1xf32>
    %204 = vector.extract_strided_slice %203 {offsets = [0, 0, 0], sizes = [1, 8, 1], strides = [1, 1, 1]} : vector<2x8x1xf32> to vector<1x8x1xf32>
    %205 = vector.shape_cast %204 : vector<1x8x1xf32> to vector<8x1xf32>
    %206 = vector.extract_strided_slice %203 {offsets = [1, 0, 0], sizes = [1, 8, 1], strides = [1, 1, 1]} : vector<2x8x1xf32> to vector<1x8x1xf32>
    %207 = vector.shape_cast %206 : vector<1x8x1xf32> to vector<8x1xf32>
    %208 = arith.subf %205, %207 : vector<8x1xf32>
    %cst_73 = arith.constant 0.000000e+00 : f32
    %209 = vector.broadcast %cst_73 : f32 to vector<8x1xf32>
    %210 = arith.subf %209, %208 : vector<8x1xf32>
    %cst_74 = arith.constant 0.000000e+00 : f32
    %211 = vector.broadcast %cst_74 : f32 to vector<8x1xf32>
    %212 = arith.maximumf %210, %211 : vector<8x1xf32>
    %213 = vector.broadcast %cst_74 : f32 to vector<8x1xf32>
    %214 = arith.subf %210, %213 : vector<8x1xf32>
    %215 = arith.cmpf one, %214, %214 : vector<8x1xf32>
    %216 = vector.broadcast %cst_74 : f32 to vector<8x1xf32>
    %217 = arith.addf %210, %216 : vector<8x1xf32>
    %218 = math.absf %214 : vector<8x1xf32>
    %cst_75 = arith.constant 0.000000e+00 : f32
    %219 = vector.broadcast %cst_75 : f32 to vector<8x1xf32>
    %220 = arith.subf %219, %218 : vector<8x1xf32>
    %221 = math.exp %220 : vector<8x1xf32>
    %222 = math.log1p %221 : vector<8x1xf32>
    %223 = arith.addf %212, %222 : vector<8x1xf32>
    %224 = arith.select %215, %217, %223 : vector<8x1xi1>, vector<8x1xf32>
    %225 = vector.shape_cast %224 : vector<8x1xf32> to vector<1x8x1xf32>
    %cst_76 = arith.constant dense<0.000000e+00> : vector<1xf32>
    %226 = vector.multi_reduction <add>, %225, %cst_76 [1, 2] : vector<1x8x1xf32> to vector<1xf32>
    %227 = vector.shape_cast %226 : vector<1xf32> to vector<1x1x1xf32>
    %228 = vector.extract %227[0, 0, 0] : f32 from vector<1x1x1xf32>
    %cst_77 = arith.constant 1.250000e-01 : f32
    %229 = arith.mulf %228, %cst_77 : f32
    %230 = arith.mulf %192, %192 : vector<3x8x64xf32>
    %231 = vector.shape_cast %230 : vector<3x8x64xf32> to vector<1x3x8x64xf32>
    %cst_78 = arith.constant dense<0.000000e+00> : vector<1xf32>
    %232 = vector.multi_reduction <add>, %231, %cst_78 [1, 2, 3] : vector<1x3x8x64xf32> to vector<1xf32>
    %233 = vector.shape_cast %232 : vector<1xf32> to vector<1x1x1x1xf32>
    %234 = vector.extract %233[0, 0, 0, 0] : f32 from vector<1x1x1x1xf32>
    %cst_79 = arith.constant 6.250000e-02 : f32
    %235 = arith.mulf %234, %cst_79 : f32
    %cst_80 = arith.constant 9.99999974E-5 : f32
    %236 = arith.mulf %cst_80, %235 : f32
    %237 = arith.addf %229, %236 : f32
    %c0_81 = arith.constant 0 : index
    %c0_82 = arith.constant 0 : index
    %238 = memref.load %arg6[%c0_81, %c0_82] : memref<1x1xf32, #tpu.memory_space<smem>>
    memref.store %237, %arg6[%c0_81, %c0_82] : memref<1x1xf32, #tpu.memory_space<smem>>
    return
  }
  func.func @transform_0(%arg0: i32, %arg1: memref<8xi32, #tpu.memory_space<smem>>, %arg2: memref<8xi32, #tpu.memory_space<smem>>, %arg3: memref<8xi32, #tpu.memory_space<smem>>) -> (i32, i32) {
    %c0_i32 = arith.constant 0 : i32
    %c0_i32_0 = arith.constant 0 : i32
    %c0_i32_1 = arith.constant 0 : i32
    return %c0_i32, %c0_i32_0 : i32, i32
  }
  func.func @transform_1(%arg0: i32, %arg1: memref<8xi32, #tpu.memory_space<smem>>, %arg2: memref<8xi32, #tpu.memory_space<smem>>, %arg3: memref<8xi32, #tpu.memory_space<smem>>) -> (i32, i32) {
    %c0_i32 = arith.constant 0 : i32
    %c0_i32_0 = arith.constant 0 : i32
    %c0_i32_1 = arith.constant 0 : i32
    return %c0_i32, %c0_i32_0 : i32, i32
  }
  func.func @transform_2(%arg0: i32, %arg1: memref<8xi32, #tpu.memory_space<smem>>, %arg2: memref<8xi32, #tpu.memory_space<smem>>, %arg3: memref<8xi32, #tpu.memory_space<smem>>) -> (i32, i32) {
    %c0_i32 = arith.constant 0 : i32
    %c0_i32_0 = arith.constant 0 : i32
    %c0_i32_1 = arith.constant 0 : i32
    return %c0_i32, %c0_i32_0 : i32, i32
  }
}

</mosaic_0001>

<llo_original>
// kernel: bprmf_forward.1
$region0: #{bprmf_forward.1}
  #allocation0 [shape = 'u32[]', space=smem, size = 0x4, offset = 0x4, fixed_abs, tag = 'smem constant byte address 0x4 - core index']
  #allocation1 [shape = 'u32[144,128]{1,0:T(1,128)}', space=vmem, size = 0x12000, scoped, tag = 'internal scratch']
  #allocation2 [shape = 'f32[3,8,64]{2,1,0:T(8,128)}', space=vmem, size = 0x3000, scoped, tag = 'scratch operand']
  #allocation3 [shape = 's32[1]{0}', space=sflag, size = 0x4, scoped, tag = 'scoped memory for bprmf_forward.1']
  #allocation4 [shape = 'u8[512]{0}', space=smem, size = 0x200, scoped, tag = 'prefetched SMEM operand 0']
  #allocation5 [shape = 'u8[512]{0}', space=smem, size = 0x200, scoped, tag = 'prefetched SMEM operand 1']
  #allocation6 [shape = 'u8[512]{0}', space=smem, size = 0x200, scoped, tag = 'prefetched SMEM operand 2']
  %s0 = inlined_call_operand.vmem [shape: s32[8], index: 0, kind: input, shape index: {}]
  %s1 = inlined_call_operand.vmem [shape: s32[8], index: 1, kind: input, shape index: {}]
  %s2 = inlined_call_operand.vmem [shape: s32[8], index: 2, kind: input, shape index: {}]
  %s3 = inlined_call_operand.hbm [shape: f32[32,64], index: 3, kind: input, shape index: {}]
  %s4 = inlined_call_operand.hbm [shape: f32[48,64], index: 4, kind: input, shape index: {}]
  %s5 = inlined_call_operand.hbm [shape: f32[1,1], index: 5, kind: output, shape index: {}]
  %s6 = sld [smem:[#allocation0]]
  $region26: #{bprmf_forward.1} parent=0
    _
  %s8 = ssub.s32 1, %s6
  %s9 = scalar_select 0, %s8, %s6
  %s10 = sshll.u32 %s0, 4
  %s11 = int_to_ptr.vmem [resolvable:$true] %s10
  %13 = dma.vmem_to_smem %s11, 16, [#allocation4], [#allocation3]
  %s14 = sshll.u32 %s1, 4
  %s15 = int_to_ptr.vmem [resolvable:$true] %s14
  %17 = dma.vmem_to_smem %s15, 16, [#allocation5], [#allocation3]
  %s18 = sshll.u32 %s2, 4
  %s19 = int_to_ptr.vmem [resolvable:$true] %s18
  %21 = dma.vmem_to_smem %s19, 16, [#allocation6], [#allocation3]
  %22 = dma.done [#allocation3], 48
  %23 = sfence
  $region1: #{bprmf_forward.1} parent=0
    #allocation7 [shape = 'u8[16384]{0}', space=vmem, size = 0x4000, scoped, tag = 'input window, operand 3, single buffered']
    #allocation8 [shape = 's32[1]{0}', space=sflag, size = 0x4, scoped, tag = 'scoped memory for bprmf_forward.1']
    #allocation9 [shape = 's32[1]{0}', space=sflag, size = 0x4, scoped, tag = 'scoped memory for bprmf_forward.1']
    #allocation10 [shape = 'u8[24576]{0}', space=vmem, size = 0x6000, scoped, tag = 'input window, operand 4, single buffered']
    #allocation11 [shape = 's32[1]{0}', space=sflag, size = 0x4, scoped, tag = 'scoped memory for bprmf_forward.1']
    #allocation12 [shape = 'u8[512]{0}', space=smem, size = 0x200, scoped, tag = 'output window, operand 0, single buffered']
    %24 = vsyncpa [#allocation8], 0
    %25 = vsyncpa [#allocation11], 0
    %26 = vsyncpa [#allocation9], 0
    // Predicated region
    $region2: #{bprmf_forward.1} parent=1 // pred_check
      _
    $region3: #{bprmf_forward.1} parent=1 // pred_check_branch
      %28 = sbr.rel (0) target = $region5
    $region4: #{bprmf_forward.1} parent=1 // pred_region
      %s30 = ssub.s32 512, 512
      %31 = vsyncadd [#allocation8], %s30
      %s32 = sshll.u32 [#allocation7], 4
      %s33 = int_to_ptr.vmem [resolvable:$true] %s32
      %38 = dma.hbm_to_vmem [thread:$0]  %s3, 512, %s33, [#allocation8], 128, 128, 8
    $region5: #{bprmf_forward.1} parent=1 // pred_fallthru
      _
    // Predicated region
    $region6: #{bprmf_forward.1} parent=1 // pred_check
      _
    $region7: #{bprmf_forward.1} parent=1 // pred_check_branch
      %40 = sbr.rel (0) target = $region9
    $region8: #{bprmf_forward.1} parent=1 // pred_region
      %s42 = ssub.s32 768, 768
      %43 = vsyncadd [#allocation11], %s42
      %s44 = sshll.u32 [#allocation10], 4
      %s45 = int_to_ptr.vmem [resolvable:$true] %s44
      %50 = dma.hbm_to_vmem [thread:$0]  %s4, 768, %s45, [#allocation11], 128, 128, 8
    $region9: #{bprmf_forward.1} parent=1 // pred_fallthru
      _
    // Predicated region
    $region10: #{bprmf_forward.1} parent=1 // pred_check
      _
    $region11: #{bprmf_forward.1} parent=1 // pred_check_branch
      %52 = sbr.rel (0) target = $region13
    $region12: #{bprmf_forward.1} parent=1 // pred_region
      %53 = dma.done [#allocation8], 512
    $region13: #{bprmf_forward.1} parent=1 // pred_fallthru
      _
    // Predicated region
    $region14: #{bprmf_forward.1} parent=1 // pred_check
      _
    $region15: #{bprmf_forward.1} parent=1 // pred_check_branch
      %55 = sbr.rel (0) target = $region17
    $region16: #{bprmf_forward.1} parent=1 // pred_region
      %56 = dma.done [#allocation11], 768
    $region17: #{bprmf_forward.1} parent=1 // pred_fallthru
      _
    %s57 = sld [smem:[#allocation4]]
    %s58 = scalar_lea.vmem [#allocation7], %s57
    %v59 = vld [vmem:[%s58] sm:$0x1]
    %s60 = sld [smem:[#allocation5]]
    %s61 = scalar_lea.vmem [#allocation10], %s60
    %v62 = vld [vmem:[%s61] sm:$0x1]
    %s63 = sld [smem:[#allocation6]]
    %s64 = scalar_lea.vmem [#allocation10], %s63
    %v65 = vld [vmem:[%s64] sm:$0x1]
    %vm66 = vcmask 516096
    %67 = vst.msk [vmem:[#allocation2] sm:$0x1] %vm66, %v59
    %s68 = scalar_lea.vmem [#allocation2], 8
    %69 = vst.msk [vmem:[%s68] sm:$0x1] %vm66, %v62
    %s70 = scalar_lea.vmem [#allocation2], 16
    %71 = vst.msk [vmem:[%s70] sm:$0x1] %vm66, %v65
    %s72 = sld [smem:[#allocation4 + $0x1]]
    %s73 = scalar_lea.vmem [#allocation7], %s72
    %v74 = vld [vmem:[%s73] sm:$0x1]
    %s75 = sld [smem:[#allocation5 + $0x1]]
    %s76 = scalar_lea.vmem [#allocation10], %s75
    %v77 = vld [vmem:[%s76] sm:$0x1]
    %s78 = sld [smem:[#allocation6 + $0x1]]
    %s79 = scalar_lea.vmem [#allocation10], %s78
    %v80 = vld [vmem:[%s79] sm:$0x1]
    %81 = vst.msk [vmem:[#allocation2 + $0x1] sm:$0x1] %vm66, %v74
    %82 = vst.msk [vmem:[%s68 + $0x1] sm:$0x1] %vm66, %v77
    %83 = vst.msk [vmem:[%s70 + $0x1] sm:$0x1] %vm66, %v80
    %s84 = sld [smem:[#allocation4 + $0x2]]
    %s85 = scalar_lea.vmem [#allocation7], %s84
    %v86 = vld [vmem:[%s85] sm:$0x1]
    %s87 = sld [smem:[#allocation5 + $0x2]]
    %s88 = scalar_lea.vmem [#allocation10], %s87
    %v89 = vld [vmem:[%s88] sm:$0x1]
    %s90 = sld [smem:[#allocation6 + $0x2]]
    %s91 = scalar_lea.vmem [#allocation10], %s90
    %v92 = vld [vmem:[%s91] sm:$0x1]
    %93 = vst.msk [vmem:[#allocation2 + $0x2] sm:$0x1] %vm66, %v86
    %94 = vst.msk [vmem:[%s68 + $0x2] sm:$0x1] %vm66, %v89
    %95 = vst.msk [vmem:[%s70 + $0x2] sm:$0x1] %vm66, %v92
    %s96 = sld [smem:[#allocation4 + $0x3]]
    %s97 = scalar_lea.vmem [#allocation7], %s96
    %v98 = vld [vmem:[%s97] sm:$0x1]
    %s99 = sld [smem:[#allocation5 + $0x3]]
    %s100 = scalar_lea.vmem [#allocation10], %s99
    %v101 = vld [vmem:[%s100] sm:$0x1]
    %s102 = sld [smem:[#allocation6 + $0x3]]
    %s103 = scalar_lea.vmem [#allocation10], %s102
    %v104 = vld [vmem:[%s103] sm:$0x1]
    %105 = vst.msk [vmem:[#allocation2 + $0x3] sm:$0x1] %vm66, %v98
    %106 = vst.msk [vmem:[%s68 + $0x3] sm:$0x1] %vm66, %v101
    %107 = vst.msk [vmem:[%s70 + $0x3] sm:$0x1] %vm66, %v104
    %s108 = sld [smem:[#allocation4 + $0x4]]
    %s109 = scalar_lea.vmem [#allocation7], %s108
    %v110 = vld [vmem:[%s109] sm:$0x1]
    %s111 = sld [smem:[#allocation5 + $0x4]]
    %s112 = scalar_lea.vmem [#allocation10], %s111
    %v113 = vld [vmem:[%s112] sm:$0x1]
    %s114 = sld [smem:[#allocation6 + $0x4]]
    %s115 = scalar_lea.vmem [#allocation10], %s114
    %v116 = vld [vmem:[%s115] sm:$0x1]
    %117 = vst.msk [vmem:[#allocation2 + $0x4] sm:$0x1] %vm66, %v110
    %118 = vst.msk [vmem:[%s68 + $0x4] sm:$0x1] %vm66, %v113
    %119 = vst.msk [vmem:[%s70 + $0x4] sm:$0x1] %vm66, %v116
    %s120 = sld [smem:[#allocation4 + $0x5]]
    %s121 = scalar_lea.vmem [#allocation7], %s120
    %v122 = vld [vmem:[%s121] sm:$0x1]
    %s123 = sld [smem:[#allocation5 + $0x5]]
    %s124 = scalar_lea.vmem [#allocation10], %s123
    %v125 = vld [vmem:[%s124] sm:$0x1]
    %s126 = sld [smem:[#allocation6 + $0x5]]
    %s127 = scalar_lea.vmem [#allocation10], %s126
    %v128 = vld [vmem:[%s127] sm:$0x1]
    %129 = vst.msk [vmem:[#allocation2 + $0x5] sm:$0x1] %vm66, %v122
    %130 = vst.msk [vmem:[%s68 + $0x5] sm:$0x1] %vm66, %v125
    %131 = vst.msk [vmem:[%s70 + $0x5] sm:$0x1] %vm66, %v128
    %s132 = sld [smem:[#allocation4 + $0x6]]
    %s133 = scalar_lea.vmem [#allocation7], %s132
    %v134 = vld [vmem:[%s133] sm:$0x1]
    %s135 = sld [smem:[#allocation5 + $0x6]]
    %s136 = scalar_lea.vmem [#allocation10], %s135
    %v137 = vld [vmem:[%s136] sm:$0x1]
    %s138 = sld [smem:[#allocation6 + $0x6]]
    %s139 = scalar_lea.vmem [#allocation10], %s138
    %v140 = vld [vmem:[%s139] sm:$0x1]
    %141 = vst.msk [vmem:[#allocation2 + $0x6] sm:$0x1] %vm66, %v134
    %142 = vst.msk [vmem:[%s68 + $0x6] sm:$0x1] %vm66, %v137
    %143 = vst.msk [vmem:[%s70 + $0x6] sm:$0x1] %vm66, %v140
    %s144 = sld [smem:[#allocation4 + $0x7]]
    %s145 = scalar_lea.vmem [#allocation7], %s144
    %v146 = vld [vmem:[%s145] sm:$0x1]
    %s147 = sld [smem:[#allocation5 + $0x7]]
    %s148 = scalar_lea.vmem [#allocation10], %s147
    %v149 = vld [vmem:[%s148] sm:$0x1]
    %s150 = sld [smem:[#allocation6 + $0x7]]
    %s151 = scalar_lea.vmem [#allocation10], %s150
    %v152 = vld [vmem:[%s151] sm:$0x1]
    %153 = vst.msk [vmem:[#allocation2 + $0x7] sm:$0x1] %vm66, %v146
    %154 = vst.msk [vmem:[%s68 + $0x7] sm:$0x1] %vm66, %v149
    %155 = vst.msk [vmem:[%s70 + $0x7] sm:$0x1] %vm66, %v152
    %v156 = vld [vmem:[#allocation2] sm:$0xff]
    %v157 = vld [vmem:[#allocation2 + $0x8] sm:$0xff]
    %v158 = vld [vmem:[#allocation2 + $0x10] sm:$0xff]
    %v159 = vmul.f32 %v157, %v156
    %v160 = vmul.f32 %v158, %v156
    %vm161 = vcmask 523264
    %v162 = vsel %vm161, %v159, 0.0
    %163 = vadd.xlane.f32.xlu0 %v162
    %v164 = vpop.xlane.xlu0 %163
    %v165 = vsel %vm161, %v160, 0.0
    %166 = vadd.xlane.f32.xlu0 %v165
    %v167 = vpop.xlane.xlu0 %166
    %v168 = vxor.u32 %v164, 2147483648
    %v169 = vxor.u32 %v167, 2147483648
    %v170 = vmul.f32 %v168, 1.442695
    %v171 = vpow.pop %v170
    %v172 = vmul.f32 %v169, 1.442695
    %v173 = vpow.pop %v172
    %v174 = vadd.f32 %v171, 1.0
    %v175 = vadd.f32 %v173, 1.0
    %v176 = vrcp.pop %v174
    %v177 = vmul.f32 1.0, %v176
    %v178 = vrcp.pop %v175
    %v179 = vmul.f32 1.0, %v178
    %v180 = vsub.f32 %v177, %v179
    %v181 = vsub.f32 0.0, %v180
    %v182 = vmax.f32 %v181, 0.0
    %vm183 = vcmp.ne.f32.partialorder %v181, %v181
    %v184 = vadd.f32 %v181, 0.0
    %v185 = vand.u32 2147483647, %v181
    %v186 = vsub.f32 0.0, %v185
    %v187 = vmul.f32 %v186, 1.442695
    %v188 = vpow.pop %v187
    %v189 = vadd.f32 %v188, 1.0
    %v190 = vlog2.pop %v189
    %v191 = vmul.f32 %v190, 0.6931472
    %v192 = vmul.f32 -0.5, %v188
    %v193 = vadd.f32 %v192, 1.0
    %v194 = vmul.f32 %v193, %v188
    %v195 = vand.u32 2147483647, %v188
    %vm196 = vcmp.lt.f32.partialorder %v195, 0.0004427343
    %v197 = vsel %vm196, %v194, %v191
    %v198 = vadd.f32 %v182, %v197
    %v199 = vsel %vm183, %v184, %v198
    %vm200 = vcmask 7168
    %v201 = vsel %vm200, %v199, 0.0
    %202 = vadd.xlane.f32.xlu0 %v201
    %v203 = vpop.xlane.xlu0 %202
    %v204 = vrot.slane %v203, 4
    %v205 = vadd.f32 %v203, %v204
    %v206 = vrot.slane %v205, 2
    %v207 = vadd.f32 %v205, %v206
    %v208 = vrot.slane %v207, 1
    %v209 = vadd.f32 %v207, %v208
    %s210 = vtos %v209
    %s211 = smul.f32 %s210, 0.125
    %v212 = vmul.f32 %v156, %v156
    %v213 = vmul.f32 %v157, %v157
    %v214 = vmul.f32 %v158, %v158
    %v215 = vsel %vm161, %v212, 0.0
    %v216 = vsel %vm161, %v213, 0.0
    %v217 = vadd.f32 %v215, %v216
    %v218 = vsel %vm161, %v214, 0.0
    %v219 = vadd.f32 %v217, %v218
    %220 = vadd.xlane.f32.xlu0 %v219
    %v221 = vpop.xlane.xlu0 %220
    %v222 = vrot.slane %v221, 4
    %v223 = vadd.f32 %v221, %v222
    %v224 = vrot.slane %v223, 2
    %v225 = vadd.f32 %v223, %v224
    %v226 = vrot.slane %v225, 1
    %v227 = vadd.f32 %v225, %v226
    %s228 = vtos %v227
    %s229 = smul.f32 %s228, 0.0625
    %s230 = smul.f32 %s229, 0.0001
    %s231 = sadd.f32 %s211, %s230
    %s232 = scalar_lea.smem [#allocation12], 0
    %233 = sst [smem:[%s232]] %s231
    // Predicated region
    $region18: #{bprmf_forward.1} parent=1 // pred_check
      _
    $region19: #{bprmf_forward.1} parent=1 // pred_check_branch
      %235 = sbr.rel (0) target = $region21
    $region20: #{bprmf_forward.1} parent=1 // pred_region
      %s237 = ssub.s32 16, 16
      %238 = vsyncadd [#allocation9], %s237
      %241 = dma.smem_to_hbm [#allocation12], 16, %s5, [#allocation9]
    $region21: #{bprmf_forward.1} parent=1 // pred_fallthru
      _
    // Predicated region
    $region22: #{bprmf_forward.1} parent=1 // pred_check
      _
    $region23: #{bprmf_forward.1} parent=1 // pred_check_branch
      %243 = sbr.rel (0) target = $region25
    $region24: #{bprmf_forward.1} parent=1 // pred_region
      %244 = dma.done [#allocation9], 16
    $region25: #{bprmf_forward.1} parent=1 // pred_fallthru
      _
    %245 = sfence
    %246 = vsyncpa [#allocation8], 1
    %247 = vsyncpa [#allocation11], 1
    %248 = vsyncpa [#allocation9], 1

</llo_original>
